<compile_context>
chip_gen: v5e
topology: v5e:2x2
jax: 0.10.0
libtpu: 0.0.40
codegen_flags: <defaults>
</compile_context>

<pallas_src>
import jax
import jax.numpy as jnp
from jax.experimental import pallas as pl
from jax.experimental.pallas import tpu as pltpu

_WIDTH = 128            # lane-tile width; all layer dims here are << 128
_ONE_LANE = _WIDTH - 1  # reserved lane carrying the constant 1.0 (bias fold)


def _round_up(n, m):
    return ((n + m - 1) // m) * m


# ---------------------------------------------------------------------------
# Parameter packing: one (n_layers*128, 128) f32 slab of full MXU tiles
# ---------------------------------------------------------------------------
def pack_params(params):
    """Pack all layers into a single tile-aligned f32 slab.

    Each layer occupies one full (128, 128) tile:
      rows 0..din-1 , cols 0..dout-1 : weight
      row  127      , cols 0..dout-1 : bias (picked up by the ones-lane of h)
    The mean/std heads are fused along the output axis into the last tile.
    Zero padding is mathematically inert (zero K rows contribute nothing,
    relu(0)=tanh(0)=0), so every layer becomes one clean (B,128)@(128,128)
    MXU pass with no sub-tile slicing or relayouts.
    """
    blocks = list(params["hidden"])
    w_head = jnp.concatenate([params["w_mean"], params["w_std"]], axis=1)
    b_head = jnp.concatenate([params["b_mean"], params["b_std"]], axis=1)
    blocks.append((w_head, b_head))

    n = len(blocks)
    tiles = []
    for idx, (w, b) in enumerate(blocks):
        din, dout = int(w.shape[0]), int(w.shape[1])
        assert din <= _WIDTH - 1, "input dim collides with the reserved ones-lane"
        max_out = _WIDTH if idx == n - 1 else _WIDTH - 1
        assert dout <= max_out, "layer too wide for the fixed 128-lane packing"
        tile = jnp.zeros((_WIDTH, _WIDTH), jnp.float32)
        tile = tile.at[:din, :dout].set(w.astype(jnp.float32))
        tile = tile.at[_ONE_LANE, :dout].set(b.astype(jnp.float32).reshape(-1))
        tiles.append(tile)
    return jnp.concatenate(tiles, axis=0)


# ---------------------------------------------------------------------------
# Kernel
# ---------------------------------------------------------------------------
def _make_policy_kernel(activations, action_dims, batch_pad):
    n_hidden = len(activations)

    def kernel(x_ref, p_ref, out_ref):
        # Lane iota / masks computed once (JAX does not CSE broadcasts).
        col = jax.lax.broadcasted_iota(jnp.int32, (batch_pad, _WIDTH), 1)
        is_one_lane = col == _ONE_LANE
        is_mean_lane = col < action_dims

        h = x_ref[...]                      # (Bp, 128), ones-lane already set

        # Hidden stack: each layer is one aligned (Bp,128)@(128,128) matmul,
        # activation, and a single select re-arming the ones-lane (bias fold).
        for li, act in enumerate(activations):
            w = p_ref[li * _WIDTH:(li + 1) * _WIDTH, :]   # tile-aligned view
            y = jnp.dot(h, w, preferred_element_type=jnp.float32)
            if act == "relu":
                a = jnp.maximum(y, 0.0)
            elif act == "tanh":
                a = jnp.tanh(y)
            else:
                raise ValueError(f"Unsupported activation function: {act}")
            h = jnp.where(is_one_lane, 1.0, a)

        # Fused mean/std head: one matmul, one lane-dense store.
        w = p_ref[n_hidden * _WIDTH:(n_hidden + 1) * _WIDTH, :]
        y = jnp.dot(h, w, preferred_element_type=jnp.float32)

        # Numerically stable softplus; applied only to lanes >= action_dims
        # (std head + inert padding lanes; the wrapper slices the real columns).
        sp = jnp.where(y > 20.0, y, jnp.log1p(jnp.exp(jnp.minimum(y, 20.0))))
        out_ref[...] = jnp.where(is_mean_lane, y, sp)

    return kernel


# ---------------------------------------------------------------------------
# Wrapper
# ---------------------------------------------------------------------------
def policy_network_forward(x, params, activations):
    """Policy_Network forward as a single gridless Pallas kernel.

    Exactly two input DMAs (lane-dense padded x + packed params) and one
    lane-dense output DMA; mean/std are sliced from the padded output here.
    """
    batch = int(x.shape[0])
    obs_dims = int(x.shape[1])
    action_dims = int(params["w_mean"].shape[1])
    batch_pad = _round_up(max(batch, 8), 8)

    packed = pack_params(params)

    # Lane-dense input tile with the reserved ones-lane (layout plumbing only).
    x_pad = jnp.zeros((batch_pad, _WIDTH), jnp.float32)
    x_pad = x_pad.at[:batch, :obs_dims].set(x.astype(jnp.float32))
    x_pad = x_pad.at[:, _ONE_LANE].set(1.0)

    kernel = _make_policy_kernel(tuple(activations), action_dims, batch_pad)
    vmem = pl.BlockSpec(memory_space=pltpu.MemorySpace.VMEM)

    # Advisory cost estimate (padded shapes = actual MXU work).
    n_layers = len(activations) + 1
    flops = 2 * batch_pad * _WIDTH * _WIDTH * n_layers
    trans = batch_pad * _WIDTH * (sum(1 for a in activations if a == "tanh") + 2)
    bytes_accessed = 4 * (x_pad.size + packed.size + batch_pad * _WIDTH)
    cost = pl.CostEstimate(flops=flops, transcendentals=trans,
                           bytes_accessed=bytes_accessed)

    out = pl.pallas_call(
        kernel,
        out_shape=jax.ShapeDtypeStruct((batch_pad, _WIDTH), jnp.float32),
        in_specs=[vmem, vmem],
        out_specs=vmem,
        cost_estimate=cost,
    )(x_pad, packed)

    return out[:batch, :action_dims], out[:batch, action_dims:2 * action_dims]


# ---------------------------------------------------------------------------
# Deterministic parameter init (mirrors nn.Linear default U(-1/sqrt(in), 1/sqrt(in)))
# ---------------------------------------------------------------------------
def init_params(key, obs_dims, action_dims, hidden_layers):
    def linear(key, fan_in, fan_out):
        kw, kb = jax.random.split(key)
        bound = 1.0 / jnp.sqrt(jnp.float32(fan_in))
        w = jax.random.uniform(kw, (fan_in, fan_out), jnp.float32, -bound, bound)
        b = jax.random.uniform(kb, (1, fan_out), jnp.float32, -bound, bound)
        return w, b

    params = {"hidden": []}
    in_dim = obs_dims
    for h in hidden_layers:
        key, sub = jax.random.split(key)
        params["hidden"].append(linear(sub, in_dim, h))
        in_dim = h
    key, km = jax.random.split(key)
    params["w_mean"], params["b_mean"] = linear(km, in_dim, action_dims)
    key, ks = jax.random.split(key)
    params["w_std"], params["b_std"] = linear(ks, in_dim, action_dims)
    return params


# Pure-JAX reference (literal torch math) for a silent correctness check.
# Note: the kernel uses a thresholded softplus that differs from log1p(exp)
# only where torch would overflow to inf (|y| > 20) -- not hit at small init.
def reference_forward(x, params, activations):
    h = x.astype(jnp.float32)
    for (w, b), act in zip(params["hidden"], activations):
        h = h @ w + b
        h = jnp.maximum(h, 0.0) if act == "relu" else jnp.tanh(h)
    mean = h @ params["w_mean"] + params["b_mean"]
    std = jnp.log1p(jnp.exp(h @ params["w_std"] + params["b_std"]))
    return mean, std


# ---------------------------------------------------------------------------
# Main
# ---------------------------------------------------------------------------
if __name__ == "__main__":
    # InvertedPendulum-v2: obs dim 4, action dim 1.
    obs_space_dims = 4
    action_space_dims = 1
    hidden_layers = [32, 32]
    activations = ["tanh", "relu"]
    batch = 8

    key = jax.random.PRNGKey(0)
    key_x, key_p = jax.random.split(key)

    x = jax.random.normal(key_x, (batch, obs_space_dims), dtype=jnp.float32)
    params = init_params(key_p, obs_space_dims, action_space_dims, hidden_layers)

    mean, std = policy_network_forward(x, params, activations)
    mean = jax.block_until_ready(mean)
    std = jax.block_until_ready(std)

    ref_mean, ref_std = reference_forward(x, params, activations)
    assert mean.shape == (batch, action_space_dims)
    assert std.shape == (batch, action_space_dims)
    assert jnp.allclose(mean, ref_mean, atol=1e-5, rtol=1e-5)
    assert jnp.allclose(std, ref_std, atol=1e-5, rtol=1e-5)
    assert bool(jnp.all(std > 0.0))  # softplus output is strictly positive

    print("KERNEL_OK")
</pallas_src>

<mosaic_0001>
module attributes {stable_mosaic.version = 11 : i64} {
  func.func @kernel(%arg0: memref<8x128xf32, #tpu.memory_space<vmem>>, %arg1: memref<384x128xf32, #tpu.memory_space<vmem>>, %arg2: memref<8x128xf32, #tpu.memory_space<vmem>>) attributes {dimension_semantics = [], scalar_prefetch = 0 : i64, scratch_operands = 0 : i64, tpu.core_type = #tpu.core_type<tc>} {
    %0 = tpu.iota {dimensions = array<i32: 1>} : vector<8x128xi32>
    %c127_i32 = arith.constant 127 : i32
    %1 = vector.broadcast %c127_i32 : i32 to vector<8x128xi32>
    %2 = arith.cmpi eq, %0, %1 : vector<8x128xi32>
    %c1_i32 = arith.constant 1 : i32
    %3 = vector.broadcast %c1_i32 : i32 to vector<8x128xi32>
    %4 = arith.cmpi slt, %0, %3 : vector<8x128xi32>
    %c0 = arith.constant 0 : index
    %c0_0 = arith.constant 0 : index
    %5 = vector.load %arg0[%c0, %c0_0] : memref<8x128xf32, #tpu.memory_space<vmem>>, vector<8x128xf32>
    %c0_1 = arith.constant 0 : index
    %c0_2 = arith.constant 0 : index
    %6 = vector.load %arg1[%c0_1, %c0_2] : memref<384x128xf32, #tpu.memory_space<vmem>>, vector<128x128xf32>
    %cst = arith.constant dense<0.000000e+00> : vector<8x128xf32>
    %7 = tpu.matmul %5, %6, %cst {dimension_numbers = #tpu.dot_dimension_numbers<[1], [0], [0], [1], [0, 0, 1, 1], [], []>} : vector<8x128xf32>, vector<128x128xf32>, vector<8x128xf32> -> vector<8x128xf32>
    %8 = math.tanh %7 : vector<8x128xf32>
    %cst_3 = arith.constant 1.000000e+00 : f32
    %9 = vector.broadcast %cst_3 : f32 to vector<8x128xf32>
    %10 = arith.select %2, %9, %8 : vector<8x128xi1>, vector<8x128xf32>
    %c128 = arith.constant 128 : index
    %c0_4 = arith.constant 0 : index
    %11 = vector.load %arg1[%c128, %c0_4] : memref<384x128xf32, #tpu.memory_space<vmem>>, vector<128x128xf32>
    %cst_5 = arith.constant dense<0.000000e+00> : vector<8x128xf32>
    %12 = tpu.matmul %10, %11, %cst_5 {dimension_numbers = #tpu.dot_dimension_numbers<[1], [0], [0], [1], [0, 0, 1, 1], [], []>} : vector<8x128xf32>, vector<128x128xf32>, vector<8x128xf32> -> vector<8x128xf32>
    %cst_6 = arith.constant 0.000000e+00 : f32
    %13 = vector.broadcast %cst_6 : f32 to vector<8x128xf32>
    %14 = arith.maximumf %12, %13 : vector<8x128xf32>
    %cst_7 = arith.constant 1.000000e+00 : f32
    %15 = vector.broadcast %cst_7 : f32 to vector<8x128xf32>
    %16 = arith.select %2, %15, %14 : vector<8x128xi1>, vector<8x128xf32>
    %c256 = arith.constant 256 : index
    %c0_8 = arith.constant 0 : index
    %17 = vector.load %arg1[%c256, %c0_8] : memref<384x128xf32, #tpu.memory_space<vmem>>, vector<128x128xf32>
    %cst_9 = arith.constant dense<0.000000e+00> : vector<8x128xf32>
    %18 = tpu.matmul %16, %17, %cst_9 {dimension_numbers = #tpu.dot_dimension_numbers<[1], [0], [0], [1], [0, 0, 1, 1], [], []>} : vector<8x128xf32>, vector<128x128xf32>, vector<8x128xf32> -> vector<8x128xf32>
    %cst_10 = arith.constant 2.000000e+01 : f32
    %19 = vector.broadcast %cst_10 : f32 to vector<8x128xf32>
    %20 = arith.cmpf ogt, %18, %19 : vector<8x128xf32>
    %cst_11 = arith.constant 2.000000e+01 : f32
    %21 = vector.broadcast %cst_11 : f32 to vector<8x128xf32>
    %22 = arith.minimumf %18, %21 : vector<8x128xf32>
    %23 = math.exp %22 : vector<8x128xf32>
    %24 = math.log1p %23 : vector<8x128xf32>
    %25 = arith.select %20, %18, %24 : vector<8x128xi1>, vector<8x128xf32>
    %26 = arith.select %4, %18, %25 : vector<8x128xi1>, vector<8x128xf32>
    %c0_12 = arith.constant 0 : index
    %c0_13 = arith.constant 0 : index
    %27 = vector.load %arg2[%c0_12, %c0_13] : memref<8x128xf32, #tpu.memory_space<vmem>>, vector<8x128xf32>
    tpu.vector_store %arg2[%c0_12, %c0_13], %26 {strides = array<i32>} : memref<8x128xf32, #tpu.memory_space<vmem>>, vector<8x128xf32>,
    return
  }
}

</mosaic_0001>

<llo_original>
// kernel: tpu_custom_call.1
$region0: #{tpu_custom_call.1}
  #allocation0 [shape = 'u32[]', space=smem, size = 0x4, offset = 0x4, fixed_abs, tag = 'smem constant byte address 0x4 - core index']
  #allocation1 [shape = 'u32[72,128]{1,0:T(1,128)}', space=vmem, size = 0x9000, scoped, tag = 'internal scratch']
  %s0 = inlined_call_operand.hbm [shape: f32[8,128], index: 0, kind: input, shape index: {}]
  %s1 = inlined_call_operand.hbm [shape: f32[384,128], index: 1, kind: input, shape index: {}]
  %s2 = inlined_call_operand.hbm [shape: f32[8,128], index: 2, kind: output, shape index: {}]
  %s3 = sld [smem:[#allocation0]]
  $region26: #{tpu_custom_call.1} parent=0
    _
  %s5 = ssub.s32 1, %s3
  %s6 = scalar_select 0, %s5, %s3
  $region1: #{tpu_custom_call.1} parent=0
    #allocation2 [shape = 'u8[4096]{0}', space=vmem, size = 0x1000, scoped, tag = 'input window, operand 0, single buffered']
    #allocation3 [shape = 's32[1]{0}', space=sflag, size = 0x4, scoped, tag = 'scoped memory for tpu_custom_call.1']
    #allocation4 [shape = 's32[1]{0}', space=sflag, size = 0x4, scoped, tag = 'scoped memory for tpu_custom_call.1']
    #allocation5 [shape = 'u8[196608]{0}', space=vmem, size = 0x30000, scoped, tag = 'input window, operand 1, single buffered']
    #allocation6 [shape = 's32[1]{0}', space=sflag, size = 0x4, scoped, tag = 'scoped memory for tpu_custom_call.1']
    #allocation7 [shape = 'u8[4096]{0}', space=vmem, size = 0x1000, scoped, tag = 'output window, operand 0, single buffered']
    %7 = vsyncpa [#allocation3], 0
    %8 = vsyncpa [#allocation6], 0
    %9 = vsyncpa [#allocation4], 0
    // Predicated region
    $region2: #{tpu_custom_call.1} parent=1 // pred_check
      _
    $region3: #{tpu_custom_call.1} parent=1 // pred_check_branch
      %11 = sbr.rel (0) target = $region5
    $region4: #{tpu_custom_call.1} parent=1 // pred_region
      %13 = vsyncadd [#allocation3], 0
      %s15 = sshll.u32 %s0, 4
      %s16 = int_to_ptr.hbm [resolvable:$true] %s15
      %s17 = sshll.u32 [#allocation2], 4
      %s18 = int_to_ptr.vmem [resolvable:$true] %s17
      %20 = dma.hbm_to_vmem [thread:$0]  %s16, 128, %s18, [#allocation3]
    $region5: #{tpu_custom_call.1} parent=1 // pred_fallthru
      _
    // Predicated region
    $region6: #{tpu_custom_call.1} parent=1 // pred_check
      _
    $region7: #{tpu_custom_call.1} parent=1 // pred_check_branch
      %22 = sbr.rel (0) target = $region9
    $region8: #{tpu_custom_call.1} parent=1 // pred_region
      %24 = vsyncadd [#allocation6], 0
      %s25 = sshll.u32 %s1, 4
      %s26 = int_to_ptr.hbm [resolvable:$true] %s25
      %s27 = sshll.u32 [#allocation5], 4
      %s28 = int_to_ptr.vmem [resolvable:$true] %s27
      %33 = dma.hbm_to_vmem [thread:$0]  %s26, 6144, %s28, [#allocation6], 128, 128, 8
    $region9: #{tpu_custom_call.1} parent=1 // pred_fallthru
      _
    // Predicated region
    $region10: #{tpu_custom_call.1} parent=1 // pred_check
      _
    $region11: #{tpu_custom_call.1} parent=1 // pred_check_branch
      %35 = sbr.rel (0) target = $region13
    $region12: #{tpu_custom_call.1} parent=1 // pred_region
      %37 = dma.done [#allocation3], 128
    $region13: #{tpu_custom_call.1} parent=1 // pred_fallthru
      _
    // Predicated region
    $region14: #{tpu_custom_call.1} parent=1 // pred_check
      _
    $region15: #{tpu_custom_call.1} parent=1 // pred_check_branch
      %39 = sbr.rel (0) target = $region17
    $region16: #{tpu_custom_call.1} parent=1 // pred_region
      %41 = dma.done [#allocation6], 6144
    $region17: #{tpu_custom_call.1} parent=1 // pred_fallthru
      _
    %v42 = vlaneseq
    %v43 = vand.u32 %v42, 127
    %vm44 = vcmp.eq.s32.totalorder %v43, 127
    %vm45 = vcmp.lt.s32.totalorder %v43, 1
    %v46 = vld [vmem:[#allocation2] sm:$0xff]
    %v47 = vld [vmem:[#allocation5] sm:$0xff]
    %v48 = vld [vmem:[#allocation5 + $0x8] sm:$0xff]
    %v49 = vld [vmem:[#allocation5 + $0x10] sm:$0xff]
    %v50 = vld [vmem:[#allocation5 + $0x18] sm:$0xff]
    %v51 = vld [vmem:[#allocation5 + $0x20] sm:$0xff]
    %v52 = vld [vmem:[#allocation5 + $0x28] sm:$0xff]
    %v53 = vld [vmem:[#allocation5 + $0x30] sm:$0xff]
    %v54 = vld [vmem:[#allocation5 + $0x38] sm:$0xff]
    %v55 = vld [vmem:[#allocation5 + $0x40] sm:$0xff]
    %v56 = vld [vmem:[#allocation5 + $0x48] sm:$0xff]
    %v57 = vld [vmem:[#allocation5 + $0x50] sm:$0xff]
    %v58 = vld [vmem:[#allocation5 + $0x58] sm:$0xff]
    %v59 = vld [vmem:[#allocation5 + $0x60] sm:$0xff]
    %v60 = vld [vmem:[#allocation5 + $0x68] sm:$0xff]
    %v61 = vld [vmem:[#allocation5 + $0x70] sm:$0xff]
    %v62 = vld [vmem:[#allocation5 + $0x78] sm:$0xff]
    %63 = vmatpush.msra.mxu0 %v62
    %64 = vmatpush.msra.mxu0 %v61
    %65 = vmatpush.msra.mxu0 %v60
    %66 = vmatpush.msra.mxu0 %v59
    %67 = vmatpush.msra.mxu0 %v58
    %68 = vmatpush.msra.mxu0 %v57
    %69 = vmatpush.msra.mxu0 %v56
    %70 = vmatpush.msra.mxu0 %v55
    %71 = vmatpush.msra.mxu0 %v54
    %72 = vmatpush.msra.mxu0 %v53
    %73 = vmatpush.msra.mxu0 %v52
    %74 = vmatpush.msra.mxu0 %v51
    %75 = vmatpush.msra.mxu0 %v50
    %76 = vmatpush.msra.mxu0 %v49
    %77 = vmatpush.msra.mxu0 %v48
    %78 = vmatpush.msra.mxu0 %v47
    %79 = vmatmul.f32.gmra.mxu0 %v46
    %v80 = vpop.f32.mrf.mxu0
    %v81 = vadd.f32 0.0, %v80
    %82 = vdwg.mxu0
    %v83 = vtanh.pop %v81
    %v84 = vsel %vm44, 1.0, %v83
    %v85 = vld [vmem:[#allocation5 + $0x80] sm:$0xff]
    %v86 = vld [vmem:[#allocation5 + $0x88] sm:$0xff]
    %v87 = vld [vmem:[#allocation5 + $0x90] sm:$0xff]
    %v88 = vld [vmem:[#allocation5 + $0x98] sm:$0xff]
    %v89 = vld [vmem:[#allocation5 + $0xa0] sm:$0xff]
    %v90 = vld [vmem:[#allocation5 + $0xa8] sm:$0xff]
    %v91 = vld [vmem:[#allocation5 + $0xb0] sm:$0xff]
    %v92 = vld [vmem:[#allocation5 + $0xb8] sm:$0xff]
    %v93 = vld [vmem:[#allocation5 + $0xc0] sm:$0xff]
    %v94 = vld [vmem:[#allocation5 + $0xc8] sm:$0xff]
    %v95 = vld [vmem:[#allocation5 + $0xd0] sm:$0xff]
    %v96 = vld [vmem:[#allocation5 + $0xd8] sm:$0xff]
    %v97 = vld [vmem:[#allocation5 + $0xe0] sm:$0xff]
    %v98 = vld [vmem:[#allocation5 + $0xe8] sm:$0xff]
    %v99 = vld [vmem:[#allocation5 + $0xf0] sm:$0xff]
    %v100 = vld [vmem:[#allocation5 + $0xf8] sm:$0xff]
    %101 = vmatpush.msra.mxu0 %v100
    %102 = vmatpush.msra.mxu0 %v99
    %103 = vmatpush.msra.mxu0 %v98
    %104 = vmatpush.msra.mxu0 %v97
    %105 = vmatpush.msra.mxu0 %v96
    %106 = vmatpush.msra.mxu0 %v95
    %107 = vmatpush.msra.mxu0 %v94
    %108 = vmatpush.msra.mxu0 %v93
    %109 = vmatpush.msra.mxu0 %v92
    %110 = vmatpush.msra.mxu0 %v91
    %111 = vmatpush.msra.mxu0 %v90
    %112 = vmatpush.msra.mxu0 %v89
    %113 = vmatpush.msra.mxu0 %v88
    %114 = vmatpush.msra.mxu0 %v87
    %115 = vmatpush.msra.mxu0 %v86
    %116 = vmatpush.msra.mxu0 %v85
    %117 = vmatmul.f32.gmra.mxu0 %v84
    %v118 = vpop.f32.mrf.mxu0
    %v119 = vadd.f32 0.0, %v118
    %120 = vdwg.mxu0
    %v121 = vmax.f32 %v119, 0.0
    %v122 = vsel %vm44, 1.0, %v121
    %v123 = vld [vmem:[#allocation5 + $0x100] sm:$0xff]
    %v124 = vld [vmem:[#allocation5 + $0x108] sm:$0xff]
    %v125 = vld [vmem:[#allocation5 + $0x110] sm:$0xff]
    %v126 = vld [vmem:[#allocation5 + $0x118] sm:$0xff]
    %v127 = vld [vmem:[#allocation5 + $0x120] sm:$0xff]
    %v128 = vld [vmem:[#allocation5 + $0x128] sm:$0xff]
    %v129 = vld [vmem:[#allocation5 + $0x130] sm:$0xff]
    %v130 = vld [vmem:[#allocation5 + $0x138] sm:$0xff]
    %v131 = vld [vmem:[#allocation5 + $0x140] sm:$0xff]
    %v132 = vld [vmem:[#allocation5 + $0x148] sm:$0xff]
    %v133 = vld [vmem:[#allocation5 + $0x150] sm:$0xff]
    %v134 = vld [vmem:[#allocation5 + $0x158] sm:$0xff]
    %v135 = vld [vmem:[#allocation5 + $0x160] sm:$0xff]
    %v136 = vld [vmem:[#allocation5 + $0x168] sm:$0xff]
    %v137 = vld [vmem:[#allocation5 + $0x170] sm:$0xff]
    %v138 = vld [vmem:[#allocation5 + $0x178] sm:$0xff]
    %139 = vmatpush.msra.mxu0 %v138
    %140 = vmatpush.msra.mxu0 %v137
    %141 = vmatpush.msra.mxu0 %v136
    %142 = vmatpush.msra.mxu0 %v135
    %143 = vmatpush.msra.mxu0 %v134
    %144 = vmatpush.msra.mxu0 %v133
    %145 = vmatpush.msra.mxu0 %v132
    %146 = vmatpush.msra.mxu0 %v131
    %147 = vmatpush.msra.mxu0 %v130
    %148 = vmatpush.msra.mxu0 %v129
    %149 = vmatpush.msra.mxu0 %v128
    %150 = vmatpush.msra.mxu0 %v127
    %151 = vmatpush.msra.mxu0 %v126
    %152 = vmatpush.msra.mxu0 %v125
    %153 = vmatpush.msra.mxu0 %v124
    %154 = vmatpush.msra.mxu0 %v123
    %155 = vmatmul.f32.gmra.mxu0 %v122
    %v156 = vpop.f32.mrf.mxu0
    %v157 = vadd.f32 0.0, %v156
    %158 = vdwg.mxu0
    %vm159 = vcmp.gt.f32.partialorder %v157, 20.0
    %v160 = vmin.f32 %v157, 20.0
    %v161 = vmul.f32 %v160, 1.442695
    %v162 = vpow.pop %v161
    %v163 = vadd.f32 %v162, 1.0
    %v164 = vlog2.pop %v163
    %v165 = vmul.f32 %v164, 0.6931472
    %v166 = vmul.f32 -0.5, %v162
    %v167 = vadd.f32 %v166, 1.0
    %v168 = vmul.f32 %v167, %v162
    %v169 = vand.u32 2147483647, %v162
    %vm170 = vcmp.lt.f32.partialorder %v169, 0.0004427343
    %v171 = vsel %vm170, %v168, %v165
    %v172 = vsel %vm159, %v157, %v171
    %v173 = vsel %vm45, %v157, %v172
    %174 = vst [vmem:[#allocation7] sm:$0xff] %v173
    // Predicated region
    $region18: #{tpu_custom_call.1} parent=1 // pred_check
      _
    $region19: #{tpu_custom_call.1} parent=1 // pred_check_branch
      %176 = sbr.rel (0) target = $region21
    $region20: #{tpu_custom_call.1} parent=1 // pred_region
      %178 = vsyncadd [#allocation4], 0
      %s180 = sshll.u32 [#allocation7], 4
      %s181 = int_to_ptr.vmem [resolvable:$true] %s180
      %s182 = sshll.u32 %s2, 4
      %s183 = int_to_ptr.hbm [resolvable:$true] %s182
      %185 = dma.vmem_to_hbm [thread:$0]  %s181, 128, %s183, [#allocation4]
    $region21: #{tpu_custom_call.1} parent=1 // pred_fallthru
      _
    // Predicated region
    $region22: #{tpu_custom_call.1} parent=1 // pred_check
      _
    $region23: #{tpu_custom_call.1} parent=1 // pred_check_branch
      %187 = sbr.rel (0) target = $region25
    $region24: #{tpu_custom_call.1} parent=1 // pred_region
      %189 = dma.done [#allocation4], 128
    $region25: #{tpu_custom_call.1} parent=1 // pred_fallthru
      _
    %190 = vsyncpa [#allocation3], 1
    %191 = vsyncpa [#allocation6], 1
    %192 = vsyncpa [#allocation4], 1

</llo_original>
